<compile_context>
chip_gen: v5e
topology: v5e:2x2
jax: 0.10.0
libtpu: 0.0.40
codegen_flags: <defaults>
</compile_context>

<pallas_src>
import inspect

import jax
import jax.numpy as jnp
from jax.experimental import pallas as pl
from jax.experimental.pallas import tpu as pltpu

N_ACTIONS = 6                      # env.single_action_space.n (synthetic)
FEAT_DIM = 632                     # fixed by Linear(632, 84)
HIDDEN = 84
HP = 128                           # per-head hidden, padded to a lane multiple
H2 = 2 * HP                        # fused hidden width (action cols 0..127, value cols 128..255)
OUT_PAD = 128                      # lane-dense packed output width
IMG_H, IMG_W, IMG_C = 8, 8, 8      # 8*8*8 = 512 image features after flatten
IMG_FLAT = IMG_H * IMG_W * IMG_C
VEC_DIM = FEAT_DIM - IMG_FLAT      # 120 vector features


def _policy_kernel(xv_ref, xi_ref, w1v_ref, w1i_ref, b1_ref, w2_ref, b2_ref, out_ref):
    """Fused action + value heads.

    xv_ref : (TB, 120)  vector input (bf16)
    xi_ref : (TB, 512)  NHWC-flattened image (uint8 or bf16, raw 0..255; /255 folded in w1i)
    w1v_ref: (120, 256) bf16   [action head cols 0..83 | pad | value head cols 128..211 | pad]
    w1i_ref: (512, 256) bf16   same packing, rows permuted to NHWC order and pre-scaled by 1/255
    b1_ref : (1, 256)   f32
    w2_ref : (256, 128) bf16   block-diagonal second layers (logits lanes 0..5, value lane 6)
    b2_ref : (1, 128)   f32
    out_ref: (TB, 128)  bf16   lanes 0..5 = softmax probs, lane 6 = state value, rest zero
    """
    # Inputs arrive narrow; widen on the VPU (free — kernel is HBM-bound).
    # Integer values 0..255 are exact in bf16.
    xv = xv_ref[...].astype(jnp.bfloat16)
    xi = xi_ref[...].astype(jnp.float32).astype(jnp.bfloat16)

    # Fused first layer (both heads): split-K matmul over the two input chunks.
    h = (jnp.dot(xv, w1v_ref[...], preferred_element_type=jnp.float32)
         + jnp.dot(xi, w1i_ref[...], preferred_element_type=jnp.float32)
         + b1_ref[...])
    h = jnp.maximum(h, 0.0)                                   # (TB, 256), padded cols stay 0

    # Fused second layer (block diagonal): one matmul produces logits + value.
    z = (jnp.dot(h.astype(jnp.bfloat16), w2_ref[...],
                 preferred_element_type=jnp.float32)
         + b2_ref[...])                                       # (TB, 128), f32

    # Masked softmax over the action lanes only (lanes >= N_ACTIONS are padding / value).
    col = jax.lax.broadcasted_iota(jnp.int32, z.shape, dimension=1)
    act = col < N_ACTIONS
    m = jnp.max(jnp.where(act, z, -jnp.inf), axis=-1, keepdims=True)
    e = jnp.where(act, jnp.exp(z - m), 0.0)   # keep the select (mask*exp could give inf*0=NaN)
    s = jnp.sum(e, axis=-1, keepdims=True)
    probs = e * pl.reciprocal(s, approx=True)

    # Lane-dense packed output: probs in lanes 0..5, value (z lane 6) in lane 6.
    out_ref[...] = jnp.where(act, probs,
                             jnp.where(col == N_ACTIONS, z, 0.0)).astype(out_ref.dtype)


def _pack_params(w1a, b1a, w2a, b2a, w1v_, b1v_, w2v_, b2v_):
    """Pack torch-layout (in, out) weights into the fused / padded kernel layout."""

    def split_fold(w1):
        # Rows 0..119 multiply x_vector; rows 120..631 multiply the NCHW-flattened,
        # /255-normalized image.  Fold the NCHW->NHWC row permutation and the 1/255
        # scale into the weight so the kernel can consume the raw NHWC uint8 flatten.
        wv = w1[:VEC_DIM]                                       # (120, 84)
        wi = w1[VEC_DIM:].reshape(IMG_C, IMG_H, IMG_W, HIDDEN)  # rows indexed (c, h, w)
        wi = jnp.transpose(wi, (1, 2, 0, 3))                    # rows indexed (h, w, c)
        wi = wi.reshape(IMG_FLAT, HIDDEN) / 255.0
        return wv, wi

    wva, wia = split_fold(w1a)
    wvv, wiv = split_fold(w1v_)

    w1_vec = jnp.zeros((VEC_DIM, H2), jnp.float32)
    w1_vec = w1_vec.at[:, 0:HIDDEN].set(wva).at[:, HP:HP + HIDDEN].set(wvv)
    w1_img = jnp.zeros((IMG_FLAT, H2), jnp.float32)
    w1_img = w1_img.at[:, 0:HIDDEN].set(wia).at[:, HP:HP + HIDDEN].set(wiv)
    b1 = jnp.zeros((1, H2), jnp.float32)
    b1 = b1.at[0, 0:HIDDEN].set(b1a).at[0, HP:HP + HIDDEN].set(b1v_)

    w2 = jnp.zeros((H2, OUT_PAD), jnp.float32)
    w2 = w2.at[0:HIDDEN, 0:N_ACTIONS].set(w2a)                       # action logits
    w2 = w2.at[HP:HP + HIDDEN, N_ACTIONS:N_ACTIONS + 1].set(w2v_)    # state value
    b2 = jnp.zeros((1, OUT_PAD), jnp.float32)
    b2 = b2.at[0, 0:N_ACTIONS].set(b2a)
    b2 = b2.at[0, N_ACTIONS].set(b2v_[0])

    return dict(
        w1_vec=w1_vec.astype(jnp.bfloat16),
        w1_img=w1_img.astype(jnp.bfloat16),
        b1=b1,
        w2=w2.astype(jnp.bfloat16),
        b2=b2,
    )


def init_params(key):
    """Deterministic synthetic parameters (torch nn.Linear-like uniform init), packed."""
    ks = jax.random.split(key, 8)

    def linear(kw, kb, fan_in, fan_out):
        bound = 1.0 / jnp.sqrt(fan_in)
        w = jax.random.uniform(kw, (fan_in, fan_out), jnp.float32, -bound, bound)
        b = jax.random.uniform(kb, (fan_out,), jnp.float32, -bound, bound)
        return w, b

    w1a, b1a = linear(ks[0], ks[1], FEAT_DIM, HIDDEN)
    w2a, b2a = linear(ks[2], ks[3], HIDDEN, N_ACTIONS)
    w1v, b1v = linear(ks[4], ks[5], FEAT_DIM, HIDDEN)
    w2v, b2v = linear(ks[6], ks[7], HIDDEN, 1)
    return _pack_params(w1a, b1a, w2a, b2a, w1v, b1v, w2v, b2v)


def _round_up(x, m):
    return ((x + m - 1) // m) * m


def _pick_batch_tile(B):
    """Batch tile (multiple of 32 — uint8 sublane tile requirement).

    B <= 256        -> one padded block (pipelining/megacore buy nothing that small)
    256 < B < 1024  -> 2 blocks (one per v7x TensorCore)
    B >= 1024       -> >= 4 blocks (2 per TensorCore: megacore + DMA/compute overlap),
                       tb kept in [256, 1024] so ~0.35 us per-grid-step overhead is amortized.
    """
    if B <= 256:
        return _round_up(max(B, 32), 32)
    if B < 1024:
        return _round_up(-(-B // 2), 32)
    return max(256, (min(1024, B // 4) // 32) * 32)


# Resident weights use a constant index_map; single-buffer them when the installed
# jax supports per-spec pipeline_mode.
try:
    _SINGLE_BUFFER = (
        {"pipeline_mode": pl.Buffered(1)}
        if hasattr(pl, "Buffered")
        and "pipeline_mode" in inspect.signature(pl.BlockSpec).parameters
        else {}
    )
except Exception:  # pragma: no cover - conservative fallback
    _SINGLE_BUFFER = {}


def _resident_spec(arr):
    return pl.BlockSpec(arr.shape, lambda i: (0, 0), **_SINGLE_BUFFER)


def policy_network_forward(params, x_vector, x_image):
    """Mirrors PolicyNetwork.forward.

    x_vector: (B, VEC_DIM) bf16 (or any float; cast to bf16)
    x_image : (B, IMG_H, IMG_W, IMG_C) uint8 in [0, 255] NHWC (or float 0..255; cast to bf16)
    returns (action_probs (B, N_ACTIONS) bf16, state_values (B, 1) bf16)
    """
    B = x_vector.shape[0]

    # Narrow the HBM streams (kernel is memory-bound). The torch forward's
    # permute(0,3,1,2)/255.0 is folded into w1_img at init, so the raw 0..255
    # NHWC flatten goes straight in — no HBM concat / normalize intermediate.
    if x_vector.dtype != jnp.bfloat16:
        x_vector = x_vector.astype(jnp.bfloat16)
    if x_image.dtype != jnp.uint8:
        x_image = x_image.astype(jnp.bfloat16)      # still raw 0..255 scale

    x_img_flat = x_image.reshape(B, IMG_FLAT)

    tb = _pick_batch_tile(B)
    B_pad = _round_up(B, tb)
    if B_pad != B:
        x_vector = jnp.pad(x_vector, ((0, B_pad - B), (0, 0)))
        x_img_flat = jnp.pad(x_img_flat, ((0, B_pad - B), (0, 0)))
    grid = (B_pad // tb,)

    out = pl.pallas_call(
        _policy_kernel,
        out_shape=jax.ShapeDtypeStruct((B_pad, OUT_PAD), jnp.bfloat16),
        grid=grid,
        in_specs=[
            pl.BlockSpec((tb, VEC_DIM), lambda i: (i, 0)),
            pl.BlockSpec((tb, IMG_FLAT), lambda i: (i, 0)),
            _resident_spec(params["w1_vec"]),
            _resident_spec(params["w1_img"]),
            _resident_spec(params["b1"]),
            _resident_spec(params["w2"]),
            _resident_spec(params["b2"]),
        ],
        out_specs=pl.BlockSpec((tb, OUT_PAD), lambda i: (i, 0)),
        compiler_params=pltpu.CompilerParams(
            dimension_semantics=("parallel",)),
    )(x_vector, x_img_flat,
      params["w1_vec"], params["w1_img"], params["b1"],
      params["w2"], params["b2"])

    action_probs = out[:B, :N_ACTIONS]
    state_values = out[:B, N_ACTIONS:N_ACTIONS + 1]
    return action_probs, state_values


if __name__ == "__main__":
    key = jax.random.PRNGKey(0)
    k_param, k_vec, k_img = jax.random.split(key, 3)

    params = init_params(k_param)

    B = 2
    x_vector = jax.random.normal(k_vec, (B, VEC_DIM), jnp.float32).astype(jnp.bfloat16)
    x_image = jax.random.randint(k_img, (B, IMG_H, IMG_W, IMG_C), 0, 256,
                                 jnp.int32).astype(jnp.uint8)

    fwd = jax.jit(policy_network_forward)
    action_probs, state_values = fwd(params, x_vector, x_image)
    jax.block_until_ready((action_probs, state_values))

    assert action_probs.shape == (B, N_ACTIONS)
    assert state_values.shape == (B, 1)
    probs_f32 = action_probs.astype(jnp.float32)
    assert bool(jnp.all(probs_f32 >= 0.0))
    # approx reciprocal (EUP) + bf16 weights/output -> loose softmax-sum check
    assert jnp.allclose(jnp.sum(probs_f32, axis=-1), 1.0, atol=1e-2)

    print("KERNEL_OK")
</pallas_src>

<mosaic_0001>
module attributes {stable_mosaic.version = 11 : i64} {
  func.func @_policy_kernel(%arg0: i32, %arg1: memref<32x120xbf16, #tpu.memory_space<vmem>>, %arg2: memref<32x512xi8, #tpu.memory_space<vmem>>, %arg3: memref<120x256xbf16, #tpu.memory_space<vmem>>, %arg4: memref<512x256xbf16, #tpu.memory_space<vmem>>, %arg5: memref<1x256xf32, #tpu.memory_space<vmem>>, %arg6: memref<256x128xbf16, #tpu.memory_space<vmem>>, %arg7: memref<1x128xf32, #tpu.memory_space<vmem>>, %arg8: memref<32x128xbf16, #tpu.memory_space<vmem>>) attributes {dimension_semantics = [#tpu.dimension_semantics<parallel>], iteration_bounds = array<i64: 1>, scalar_prefetch = 0 : i64, scratch_operands = 0 : i64, tpu.core_type = #tpu.core_type<tc>, window_params = [{transform_indices = @transform_0, window_bounds = array<i64: 32, 120>}, {transform_indices = @transform_1, window_bounds = array<i64: 32, 512>}, {pipeline_mode = #tpu.pipeline_mode<synchronous>, transform_indices = @transform_2, window_bounds = array<i64: 120, 256>}, {pipeline_mode = #tpu.pipeline_mode<synchronous>, transform_indices = @transform_3, window_bounds = array<i64: 512, 256>}, {pipeline_mode = #tpu.pipeline_mode<synchronous>, transform_indices = @transform_4, window_bounds = array<i64: 1, 256>}, {pipeline_mode = #tpu.pipeline_mode<synchronous>, transform_indices = @transform_5, window_bounds = array<i64: 256, 128>}, {pipeline_mode = #tpu.pipeline_mode<synchronous>, transform_indices = @transform_6, window_bounds = array<i64: 1, 128>}, {transform_indices = @transform_7, window_bounds = array<i64: 32, 128>}]} {
    %c0 = arith.constant 0 : index
    %c0_0 = arith.constant 0 : index
    %0 = vector.load %arg1[%c0, %c0_0] : memref<32x120xbf16, #tpu.memory_space<vmem>>, vector<32x120xbf16>
    %c0_1 = arith.constant 0 : index
    %c0_2 = arith.constant 0 : index
    %1 = vector.load %arg2[%c0_1, %c0_2] : memref<32x512xi8, #tpu.memory_space<vmem>>, vector<32x512xi8>
    %2 = arith.uitofp %1 : vector<32x512xi8> to vector<32x512xf32>
    %3 = arith.truncf %2 : vector<32x512xf32> to vector<32x512xbf16>
    %c0_3 = arith.constant 0 : index
    %c0_4 = arith.constant 0 : index
    %4 = vector.load %arg3[%c0_3, %c0_4] : memref<120x256xbf16, #tpu.memory_space<vmem>>, vector<120x256xbf16>
    %cst = arith.constant dense<0.000000e+00> : vector<32x256xf32>
    %5 = tpu.matmul %0, %4, %cst {dimension_numbers = #tpu.dot_dimension_numbers<[1], [0], [0], [1], [0, 0, 1, 1], [], []>} : vector<32x120xbf16>, vector<120x256xbf16>, vector<32x256xf32> -> vector<32x256xf32>
    %c0_5 = arith.constant 0 : index
    %c0_6 = arith.constant 0 : index
    %6 = vector.load %arg4[%c0_5, %c0_6] : memref<512x256xbf16, #tpu.memory_space<vmem>>, vector<512x256xbf16>
    %cst_7 = arith.constant dense<0.000000e+00> : vector<32x256xf32>
    %7 = tpu.matmul %3, %6, %cst_7 {dimension_numbers = #tpu.dot_dimension_numbers<[1], [0], [0], [1], [0, 0, 1, 1], [], []>} : vector<32x512xbf16>, vector<512x256xbf16>, vector<32x256xf32> -> vector<32x256xf32>
    %8 = arith.addf %5, %7 : vector<32x256xf32>
    %c0_8 = arith.constant 0 : index
    %c0_9 = arith.constant 0 : index
    %9 = vector.load %arg5[%c0_8, %c0_9] : memref<1x256xf32, #tpu.memory_space<vmem>>, vector<1x256xf32>
    %10 = vector.broadcast %9 : vector<1x256xf32> to vector<32x256xf32>
    %11 = arith.addf %8, %10 : vector<32x256xf32>
    %cst_10 = arith.constant 0.000000e+00 : f32
    %12 = vector.broadcast %cst_10 : f32 to vector<32x256xf32>
    %13 = arith.maximumf %11, %12 : vector<32x256xf32>
    %14 = arith.truncf %13 : vector<32x256xf32> to vector<32x256xbf16>
    %c0_11 = arith.constant 0 : index
    %c0_12 = arith.constant 0 : index
    %15 = vector.load %arg6[%c0_11, %c0_12] : memref<256x128xbf16, #tpu.memory_space<vmem>>, vector<256x128xbf16>
    %cst_13 = arith.constant dense<0.000000e+00> : vector<32x128xf32>
    %16 = tpu.matmul %14, %15, %cst_13 {dimension_numbers = #tpu.dot_dimension_numbers<[1], [0], [0], [1], [0, 0, 1, 1], [], []>} : vector<32x256xbf16>, vector<256x128xbf16>, vector<32x128xf32> -> vector<32x128xf32>
    %c0_14 = arith.constant 0 : index
    %c0_15 = arith.constant 0 : index
    %17 = vector.load %arg7[%c0_14, %c0_15] : memref<1x128xf32, #tpu.memory_space<vmem>>, vector<1x128xf32>
    %18 = vector.broadcast %17 : vector<1x128xf32> to vector<32x128xf32>
    %19 = arith.addf %16, %18 : vector<32x128xf32>
    %20 = tpu.iota {dimensions = array<i32: 1>} : vector<32x128xi32>
    %c6_i32 = arith.constant 6 : i32
    %21 = vector.broadcast %c6_i32 : i32 to vector<32x128xi32>
    %22 = arith.cmpi slt, %20, %21 : vector<32x128xi32>
    %cst_16 = arith.constant 0xFF800000 : f32
    %23 = vector.broadcast %cst_16 : f32 to vector<32x128xf32>
    %24 = arith.select %22, %19, %23 : vector<32x128xi1>, vector<32x128xf32>
    %cst_17 = arith.constant dense<0xFF800000> : vector<32xf32>
    %25 = vector.multi_reduction <maximumf>, %24, %cst_17 [1] : vector<32x128xf32> to vector<32xf32>
    %26 = vector.shape_cast %25 : vector<32xf32> to vector<32x1xf32>
    %27 = vector.broadcast %26 : vector<32x1xf32> to vector<32x128xf32>
    %28 = arith.subf %19, %27 : vector<32x128xf32>
    %29 = math.exp %28 : vector<32x128xf32>
    %cst_18 = arith.constant 0.000000e+00 : f32
    %30 = vector.broadcast %cst_18 : f32 to vector<32x128xf32>
    %31 = arith.select %22, %29, %30 : vector<32x128xi1>, vector<32x128xf32>
    %cst_19 = arith.constant dense<0.000000e+00> : vector<32xf32>
    %32 = vector.multi_reduction <add>, %31, %cst_19 [1] : vector<32x128xf32> to vector<32xf32>
    %33 = vector.shape_cast %32 : vector<32xf32> to vector<32x1xf32>
    %34 = tpu.reciprocal %33 {approx = true} : vector<32x1xf32> -> vector<32x1xf32>
    %35 = vector.broadcast %34 : vector<32x1xf32> to vector<32x128xf32>
    %36 = arith.mulf %31, %35 : vector<32x128xf32>
    %c6_i32_20 = arith.constant 6 : i32
    %37 = vector.broadcast %c6_i32_20 : i32 to vector<32x128xi32>
    %38 = arith.cmpi eq, %20, %37 : vector<32x128xi32>
    %cst_21 = arith.constant 0.000000e+00 : f32
    %39 = vector.broadcast %cst_21 : f32 to vector<32x128xf32>
    %40 = arith.select %38, %19, %39 : vector<32x128xi1>, vector<32x128xf32>
    %41 = arith.select %22, %36, %40 : vector<32x128xi1>, vector<32x128xf32>
    %42 = arith.truncf %41 : vector<32x128xf32> to vector<32x128xbf16>
    %c0_22 = arith.constant 0 : index
    %c0_23 = arith.constant 0 : index
    %43 = vector.load %arg8[%c0_22, %c0_23] : memref<32x128xbf16, #tpu.memory_space<vmem>>, vector<32x128xbf16>
    tpu.vector_store %arg8[%c0_22, %c0_23], %42 {strides = array<i32>} : memref<32x128xbf16, #tpu.memory_space<vmem>>, vector<32x128xbf16>,
    return
  }
  func.func @transform_0(%arg0: i32) -> (i32, i32) {
    %c0_i32 = arith.constant 0 : i32
    %c0_i32_0 = arith.constant 0 : i32
    return %arg0, %c0_i32 : i32, i32
  }
  func.func @transform_1(%arg0: i32) -> (i32, i32) {
    %c0_i32 = arith.constant 0 : i32
    %c0_i32_0 = arith.constant 0 : i32
    return %arg0, %c0_i32 : i32, i32
  }
  func.func @transform_2(%arg0: i32) -> (i32, i32) {
    %c0_i32 = arith.constant 0 : i32
    %c0_i32_0 = arith.constant 0 : i32
    %c0_i32_1 = arith.constant 0 : i32
    return %c0_i32, %c0_i32_0 : i32, i32
  }
  func.func @transform_3(%arg0: i32) -> (i32, i32) {
    %c0_i32 = arith.constant 0 : i32
    %c0_i32_0 = arith.constant 0 : i32
    %c0_i32_1 = arith.constant 0 : i32
    return %c0_i32, %c0_i32_0 : i32, i32
  }
  func.func @transform_4(%arg0: i32) -> (i32, i32) {
    %c0_i32 = arith.constant 0 : i32
    %c0_i32_0 = arith.constant 0 : i32
    %c0_i32_1 = arith.constant 0 : i32
    return %c0_i32, %c0_i32_0 : i32, i32
  }
  func.func @transform_5(%arg0: i32) -> (i32, i32) {
    %c0_i32 = arith.constant 0 : i32
    %c0_i32_0 = arith.constant 0 : i32
    %c0_i32_1 = arith.constant 0 : i32
    return %c0_i32, %c0_i32_0 : i32, i32
  }
  func.func @transform_6(%arg0: i32) -> (i32, i32) {
    %c0_i32 = arith.constant 0 : i32
    %c0_i32_0 = arith.constant 0 : i32
    %c0_i32_1 = arith.constant 0 : i32
    return %c0_i32, %c0_i32_0 : i32, i32
  }
  func.func @transform_7(%arg0: i32) -> (i32, i32) {
    %c0_i32 = arith.constant 0 : i32
    %c0_i32_0 = arith.constant 0 : i32
    return %arg0, %c0_i32 : i32, i32
  }
}

</mosaic_0001>

<llo_original>
// kernel: policy_network_forward.1
$region0: #{policy_network_forward.1}
  #allocation0 [shape = 'u32[]', space=smem, size = 0x4, offset = 0x4, fixed_abs, tag = 'smem constant byte address 0x4 - core index']
  #allocation1 [shape = 'u32[72,128]{1,0:T(1,128)}', space=vmem, size = 0x9000, scoped, tag = 'internal scratch']
  %s0 = inlined_call_operand.vmem [shape: bf16[32,120], index: 0, kind: input, shape index: {}]
  %s1 = inlined_call_operand.vmem [shape: u8[32,512], index: 1, kind: input, shape index: {}]
  %s2 = inlined_call_operand.hbm [shape: bf16[120,256], index: 2, kind: input, shape index: {}]
  %s3 = inlined_call_operand.hbm [shape: bf16[512,256], index: 3, kind: input, shape index: {}]
  %s4 = inlined_call_operand.vmem [shape: f32[1,256], index: 4, kind: input, shape index: {}]
  %s5 = inlined_call_operand.hbm [shape: bf16[256,128], index: 5, kind: input, shape index: {}]
  %s6 = inlined_call_operand.vmem [shape: f32[1,128], index: 6, kind: input, shape index: {}]
  %s7 = inlined_call_operand.vmem [shape: bf16[32,128], index: 7, kind: output, shape index: {}]
  %s8 = sld [smem:[#allocation0]]
  $region50: #{policy_network_forward.1} parent=0
    _
  %s10 = ssub.s32 1, %s8
  %s11 = scalar_select 0, %s10, %s8
  $region1: #{policy_network_forward.1} parent=0
    #allocation2 [shape = 'u8[61440]{0}', space=vmem, size = 0xf000, scoped, tag = 'input window, operand 2, single buffered']
    #allocation3 [shape = 's32[1]{0}', space=sflag, size = 0x4, scoped, tag = 'scoped memory for policy_network_forward.1']
    #allocation4 [shape = 'u8[262144]{0}', space=vmem, size = 0x40000, scoped, tag = 'input window, operand 3, single buffered']
    #allocation5 [shape = 's32[1]{0}', space=sflag, size = 0x4, scoped, tag = 'scoped memory for policy_network_forward.1']
    #allocation6 [shape = 'u8[65536]{0}', space=vmem, size = 0x10000, scoped, tag = 'input window, operand 5, single buffered']
    %12 = vsyncpa [#allocation3], 0
    %13 = vsyncpa [#allocation5], 0
    // Predicated region
    $region2: #{policy_network_forward.1} parent=1 // pred_check
      _
    $region3: #{policy_network_forward.1} parent=1 // pred_check_branch
      %15 = sbr.rel (0) target = $region5
    $region4: #{policy_network_forward.1} parent=1 // pred_region
      _
    $region5: #{policy_network_forward.1} parent=1 // pred_fallthru
      _
    // Predicated region
    $region6: #{policy_network_forward.1} parent=1 // pred_check
      _
    $region7: #{policy_network_forward.1} parent=1 // pred_check_branch
      %17 = sbr.rel (0) target = $region9
    $region8: #{policy_network_forward.1} parent=1 // pred_region
      _
    $region9: #{policy_network_forward.1} parent=1 // pred_fallthru
      _
    // Predicated region
    $region10: #{policy_network_forward.1} parent=1 // pred_check
      _
    $region11: #{policy_network_forward.1} parent=1 // pred_check_branch
      %19 = sbr.rel (0) target = $region13
    $region12: #{policy_network_forward.1} parent=1 // pred_region
      %21 = vsyncadd [#allocation3], 0
      %s22 = sshll.u32 %s2, 4
      %s23 = int_to_ptr.hbm [resolvable:$true] %s22
      %s24 = sshll.u32 [#allocation2], 4
      %s25 = int_to_ptr.vmem [resolvable:$true] %s24
      %30 = dma.hbm_to_vmem [thread:$0]  %s23, 1920, %s25, [#allocation3], 128, 128, 8
    $region13: #{policy_network_forward.1} parent=1 // pred_fallthru
      _
    // Predicated region
    $region14: #{policy_network_forward.1} parent=1 // pred_check
      _
    $region15: #{policy_network_forward.1} parent=1 // pred_check_branch
      %32 = sbr.rel (0) target = $region17
    $region16: #{policy_network_forward.1} parent=1 // pred_region
      %34 = vsyncadd [#allocation5], 0
      %s35 = sshll.u32 %s3, 4
      %s36 = int_to_ptr.hbm [resolvable:$true] %s35
      %s37 = sshll.u32 [#allocation4], 4
      %s38 = int_to_ptr.vmem [resolvable:$true] %s37
      %43 = dma.hbm_to_vmem [thread:$0]  %s36, 8192, %s38, [#allocation5], 128, 128, 8
    $region17: #{policy_network_forward.1} parent=1 // pred_fallthru
      _
    // Predicated region
    $region18: #{policy_network_forward.1} parent=1 // pred_check
      _
    $region19: #{policy_network_forward.1} parent=1 // pred_check_branch
      %45 = sbr.rel (0) target = $region21
    $region20: #{policy_network_forward.1} parent=1 // pred_region
      _
    $region21: #{policy_network_forward.1} parent=1 // pred_fallthru
      _
    // Predicated region
    $region22: #{policy_network_forward.1} parent=1 // pred_check
      _
    $region23: #{policy_network_forward.1} parent=1 // pred_check_branch
      %47 = sbr.rel (0) target = $region25
    $region24: #{policy_network_forward.1} parent=1 // pred_region
      %49 = vsyncadd [#allocation5], 0
      %s50 = sshll.u32 %s5, 4
      %s51 = int_to_ptr.hbm [resolvable:$true] %s50
      %s52 = sshll.u32 [#allocation6], 4
      %s53 = int_to_ptr.vmem [resolvable:$true] %s52
      %58 = dma.hbm_to_vmem [thread:$0]  %s51, 2048, %s53, [#allocation5], 64, 64, 4
    $region25: #{policy_network_forward.1} parent=1 // pred_fallthru
      _
    // Predicated region
    $region26: #{policy_network_forward.1} parent=1 // pred_check
      _
    $region27: #{policy_network_forward.1} parent=1 // pred_check_branch
      %60 = sbr.rel (0) target = $region29
    $region28: #{policy_network_forward.1} parent=1 // pred_region
      _
    $region29: #{policy_network_forward.1} parent=1 // pred_fallthru
      _
    // Predicated region
    $region30: #{policy_network_forward.1} parent=1 // pred_check
      _
    $region31: #{policy_network_forward.1} parent=1 // pred_check_branch
      %62 = sbr.rel (0) target = $region33
    $region32: #{policy_network_forward.1} parent=1 // pred_region
      %64 = dma.done [#allocation3], 1920
    $region33: #{policy_network_forward.1} parent=1 // pred_fallthru
      _
    // Predicated region
    $region34: #{policy_network_forward.1} parent=1 // pred_check
      _
    $region35: #{policy_network_forward.1} parent=1 // pred_check_branch
      %66 = sbr.rel (0) target = $region37
    $region36: #{policy_network_forward.1} parent=1 // pred_region
      %68 = dma.done [#allocation5], 8192
    $region37: #{policy_network_forward.1} parent=1 // pred_fallthru
      _
    // Predicated region
    $region38: #{policy_network_forward.1} parent=1 // pred_check
      _
    $region39: #{policy_network_forward.1} parent=1 // pred_check_branch
      %70 = sbr.rel (0) target = $region41
    $region40: #{policy_network_forward.1} parent=1 // pred_region
      %72 = dma.done [#allocation5], 2048
    $region41: #{policy_network_forward.1} parent=1 // pred_fallthru
      _
    %v73 = vld [vmem:[%s0] sm:$0xf]
    %v74 = vld [vmem:[%s0 + $0x4] sm:$0xf]
    %v75 = vld [vmem:[%s0 + $0x8] sm:$0xf]
    %v76 = vld [vmem:[%s0 + $0xc] sm:$0xf]
    %v77 = vld [vmem:[%s1] sm:$0xff]
    %v78 = vld [vmem:[%s1 + $0x8] sm:$0xff]
    %v79 = vld [vmem:[%s1 + $0x10] sm:$0xff]
    %v80 = vld [vmem:[%s1 + $0x18] sm:$0xff]
    %v81 = vunpack.c.0.s8 %v77
    %v82 = vunpack.c.0.s8 %v78
    %v83 = vunpack.c.0.s8 %v79
    %v84 = vunpack.c.0.s8 %v80
    %v85 = vunpack.c.1.s8 %v77
    %v86 = vunpack.c.1.s8 %v78
    %v87 = vunpack.c.1.s8 %v79
    %v88 = vunpack.c.1.s8 %v80
    %v89 = vunpack.c.2.s8 %v77
    %v90 = vunpack.c.2.s8 %v78
    %v91 = vunpack.c.2.s8 %v79
    %v92 = vunpack.c.2.s8 %v80
    %v93 = vunpack.c.3.s8 %v77
    %v94 = vunpack.c.3.s8 %v78
    %v95 = vunpack.c.3.s8 %v79
    %v96 = vunpack.c.3.s8 %v80
    %v97 = vand.u32 %v81, 255
    %v98 = vand.u32 %v82, 255
    %v99 = vand.u32 %v83, 255
    %v100 = vand.u32 %v84, 255
    %v101 = vand.u32 %v85, 255
    %v102 = vand.u32 %v86, 255
    %v103 = vand.u32 %v87, 255
    %v104 = vand.u32 %v88, 255
    %v105 = vand.u32 %v89, 255
    %v106 = vand.u32 %v90, 255
    %v107 = vand.u32 %v91, 255
    %v108 = vand.u32 %v92, 255
    %v109 = vand.u32 %v93, 255
    %v110 = vand.u32 %v94, 255
    %v111 = vand.u32 %v95, 255
    %v112 = vand.u32 %v96, 255
    %v113 = vcvt.s32.f32 %v97
    %v114 = vcvt.s32.f32 %v98
    %v115 = vcvt.s32.f32 %v99
    %v116 = vcvt.s32.f32 %v100
    %v117 = vcvt.s32.f32 %v101
    %v118 = vcvt.s32.f32 %v102
    %v119 = vcvt.s32.f32 %v103
    %v120 = vcvt.s32.f32 %v104
    %v121 = vcvt.s32.f32 %v105
    %v122 = vcvt.s32.f32 %v106
    %v123 = vcvt.s32.f32 %v107
    %v124 = vcvt.s32.f32 %v108
    %v125 = vcvt.s32.f32 %v109
    %v126 = vcvt.s32.f32 %v110
    %v127 = vcvt.s32.f32 %v111
    %v128 = vcvt.s32.f32 %v112
    %v129 = vpack.c.bf16 %v117, %v113
    %v130 = vpack.c.bf16 %v118, %v114
    %v131 = vpack.c.bf16 %v119, %v115
    %v132 = vpack.c.bf16 %v120, %v116
    %v133 = vpack.c.bf16 %v125, %v121
    %v134 = vpack.c.bf16 %v126, %v122
    %v135 = vpack.c.bf16 %v127, %v123
    %v136 = vpack.c.bf16 %v128, %v124
    %v137 = vld [vmem:[#allocation2] sm:$0xff]
    %v138 = vld [vmem:[#allocation2 + $0x8] sm:$0xff]
    %v139 = vld [vmem:[#allocation2 + $0x10] sm:$0xff]
    %v140 = vld [vmem:[#allocation2 + $0x18] sm:$0xff]
    %v141 = vld [vmem:[#allocation2 + $0x20] sm:$0xff]
    %v142 = vld [vmem:[#allocation2 + $0x28] sm:$0xff]
    %v143 = vld [vmem:[#allocation2 + $0x30] sm:$0xff]
    %v144 = vld [vmem:[#allocation2 + $0x38] sm:$0xff]
    %v145 = vld [vmem:[#allocation2 + $0x40] sm:$0xff]
    %v146 = vld [vmem:[#allocation2 + $0x48] sm:$0xff]
    %v147 = vld [vmem:[#allocation2 + $0x50] sm:$0xff]
    %v148 = vld [vmem:[#allocation2 + $0x58] sm:$0xff]
    %v149 = vld [vmem:[#allocation2 + $0x60] sm:$0xff]
    %v150 = vld [vmem:[#allocation2 + $0x68] sm:$0xff]
    %v151 = vld [vmem:[#allocation2 + $0x70] sm:$0xff]
    %v152 = vld [vmem:[#allocation4] sm:$0xff]
    %v153 = vld [vmem:[#allocation4 + $0x8] sm:$0xff]
    %v154 = vld [vmem:[#allocation4 + $0x10] sm:$0xff]
    %v155 = vld [vmem:[#allocation4 + $0x18] sm:$0xff]
    %v156 = vld [vmem:[#allocation4 + $0x20] sm:$0xff]
    %v157 = vld [vmem:[#allocation4 + $0x28] sm:$0xff]
    %v158 = vld [vmem:[#allocation4 + $0x30] sm:$0xff]
    %v159 = vld [vmem:[#allocation4 + $0x38] sm:$0xff]
    %v160 = vld [vmem:[#allocation4 + $0x40] sm:$0xff]
    %v161 = vld [vmem:[#allocation4 + $0x48] sm:$0xff]
    %v162 = vld [vmem:[#allocation4 + $0x50] sm:$0xff]
    %v163 = vld [vmem:[#allocation4 + $0x58] sm:$0xff]
    %v164 = vld [vmem:[#allocation4 + $0x60] sm:$0xff]
    %v165 = vld [vmem:[#allocation4 + $0x68] sm:$0xff]
    %v166 = vld [vmem:[#allocation4 + $0x70] sm:$0xff]
    %v167 = vld [vmem:[#allocation4 + $0x78] sm:$0xff]
    %v168 = vld [vmem:[#allocation4 + $0x80] sm:$0xff]
    %v169 = vld [vmem:[#allocation4 + $0x88] sm:$0xff]
    %v170 = vld [vmem:[#allocation4 + $0x90] sm:$0xff]
    %v171 = vld [vmem:[#allocation4 + $0x98] sm:$0xff]
    %v172 = vld [vmem:[#allocation4 + $0xa0] sm:$0xff]
    %v173 = vld [vmem:[#allocation4 + $0xa8] sm:$0xff]
    %v174 = vld [vmem:[#allocation4 + $0xb0] sm:$0xff]
    %v175 = vld [vmem:[#allocation4 + $0xb8] sm:$0xff]
    %v176 = vld [vmem:[#allocation4 + $0xc0] sm:$0xff]
    %v177 = vld [vmem:[#allocation4 + $0xc8] sm:$0xff]
    %v178 = vld [vmem:[#allocation4 + $0xd0] sm:$0xff]
    %v179 = vld [vmem:[#allocation4 + $0xd8] sm:$0xff]
    %v180 = vld [vmem:[#allocation4 + $0xe0] sm:$0xff]
    %v181 = vld [vmem:[#allocation4 + $0xe8] sm:$0xff]
    %v182 = vld [vmem:[#allocation4 + $0xf0] sm:$0xff]
    %v183 = vld [vmem:[#allocation4 + $0xf8] sm:$0xff]
    %v184 = vld [vmem:[#allocation4 + $0x100] sm:$0xff]
    %v185 = vld [vmem:[#allocation4 + $0x108] sm:$0xff]
    %v186 = vld [vmem:[#allocation4 + $0x110] sm:$0xff]
    %v187 = vld [vmem:[#allocation4 + $0x118] sm:$0xff]
    %v188 = vld [vmem:[#allocation4 + $0x120] sm:$0xff]
    %v189 = vld [vmem:[#allocation4 + $0x128] sm:$0xff]
    %v190 = vld [vmem:[#allocation4 + $0x130] sm:$0xff]
    %v191 = vld [vmem:[#allocation4 + $0x138] sm:$0xff]
    %v192 = vld [vmem:[#allocation4 + $0x140] sm:$0xff]
    %v193 = vld [vmem:[#allocation4 + $0x148] sm:$0xff]
    %v194 = vld [vmem:[#allocation4 + $0x150] sm:$0xff]
    %v195 = vld [vmem:[#allocation4 + $0x158] sm:$0xff]
    %v196 = vld [vmem:[#allocation4 + $0x160] sm:$0xff]
    %v197 = vld [vmem:[#allocation4 + $0x168] sm:$0xff]
    %v198 = vld [vmem:[#allocation4 + $0x170] sm:$0xff]
    %v199 = vld [vmem:[#allocation4 + $0x178] sm:$0xff]
    %v200 = vld [vmem:[#allocation4 + $0x180] sm:$0xff]
    %v201 = vld [vmem:[#allocation4 + $0x188] sm:$0xff]
    %v202 = vld [vmem:[#allocation4 + $0x190] sm:$0xff]
    %v203 = vld [vmem:[#allocation4 + $0x198] sm:$0xff]
    %v204 = vld [vmem:[#allocation4 + $0x1a0] sm:$0xff]
    %v205 = vld [vmem:[#allocation4 + $0x1a8] sm:$0xff]
    %v206 = vld [vmem:[#allocation4 + $0x1b0] sm:$0xff]
    %v207 = vld [vmem:[#allocation4 + $0x1b8] sm:$0xff]
    %v208 = vld [vmem:[#allocation4 + $0x1c0] sm:$0xff]
    %v209 = vld [vmem:[#allocation4 + $0x1c8] sm:$0xff]
    %v210 = vld [vmem:[#allocation4 + $0x1d0] sm:$0xff]
    %v211 = vld [vmem:[#allocation4 + $0x1d8] sm:$0xff]
    %v212 = vld [vmem:[#allocation4 + $0x1e0] sm:$0xff]
    %v213 = vld [vmem:[#allocation4 + $0x1e8] sm:$0xff]
    %v214 = vld [vmem:[#allocation4 + $0x1f0] sm:$0xff]
    %v215 = vld [vmem:[#allocation4 + $0x1f8] sm:$0xff]
    %v280 = vunpack.c.l.b16 %v152
    %v281 = vunpack.c.h.b16 %v152
    %v282 = vunpack.c.l.b16 %v153
    %v283 = vunpack.c.h.b16 %v153
    %v284 = vunpack.c.l.b16 %v154
    %v285 = vunpack.c.h.b16 %v154
    %v286 = vunpack.c.l.b16 %v155
    %v287 = vunpack.c.h.b16 %v155
    %v288 = vunpack.c.l.b16 %v156
    %v289 = vunpack.c.h.b16 %v156
    %v290 = vunpack.c.l.b16 %v157
    %v291 = vunpack.c.h.b16 %v157
    %v292 = vunpack.c.l.b16 %v158
    %v293 = vunpack.c.h.b16 %v158
    %v294 = vunpack.c.l.b16 %v159
    %v295 = vunpack.c.h.b16 %v159
    %v296 = vunpack.c.l.b16 %v160
    %v297 = vunpack.c.h.b16 %v160
    %v298 = vunpack.c.l.b16 %v161
    %v299 = vunpack.c.h.b16 %v161
    %v300 = vunpack.c.l.b16 %v162
    %v301 = vunpack.c.h.b16 %v162
    %v302 = vunpack.c.l.b16 %v163
    %v303 = vunpack.c.h.b16 %v163
    %v304 = vunpack.c.l.b16 %v164
    %v305 = vunpack.c.h.b16 %v164
    %v306 = vunpack.c.l.b16 %v165
    %v307 = vunpack.c.h.b16 %v165
    %v308 = vunpack.c.l.b16 %v166
    %v309 = vunpack.c.h.b16 %v166
    %v310 = vunpack.c.l.b16 %v167
    %v311 = vunpack.c.h.b16 %v167
    %v312 = vunpack.c.l.b16 %v168
    %v313 = vunpack.c.h.b16 %v168
    %v314 = vunpack.c.l.b16 %v169
    %v315 = vunpack.c.h.b16 %v169
    %v316 = vunpack.c.l.b16 %v170
    %v317 = vunpack.c.h.b16 %v170
    %v318 = vunpack.c.l.b16 %v171
    %v319 = vunpack.c.h.b16 %v171
    %v320 = vunpack.c.l.b16 %v172
    %v321 = vunpack.c.h.b16 %v172
    %v322 = vunpack.c.l.b16 %v173
    %v323 = vunpack.c.h.b16 %v173
    %v324 = vunpack.c.l.b16 %v174
    %v325 = vunpack.c.h.b16 %v174
    %v326 = vunpack.c.l.b16 %v175
    %v327 = vunpack.c.h.b16 %v175
    %v328 = vunpack.c.l.b16 %v176
    %v329 = vunpack.c.h.b16 %v176
    %v330 = vunpack.c.l.b16 %v177
    %v331 = vunpack.c.h.b16 %v177
    %v332 = vunpack.c.l.b16 %v178
    %v333 = vunpack.c.h.b16 %v178
    %v334 = vunpack.c.l.b16 %v179
    %v335 = vunpack.c.h.b16 %v179
    %v336 = vunpack.c.l.b16 %v180
    %v337 = vunpack.c.h.b16 %v180
    %v338 = vunpack.c.l.b16 %v181
    %v339 = vunpack.c.h.b16 %v181
    %v340 = vunpack.c.l.b16 %v182
    %v341 = vunpack.c.h.b16 %v182
    %v342 = vunpack.c.l.b16 %v183
    %v343 = vunpack.c.h.b16 %v183
    %v344 = vunpack.c.l.b16 %v184
    %v345 = vunpack.c.h.b16 %v184
    %v346 = vunpack.c.l.b16 %v185
    %v347 = vunpack.c.h.b16 %v185
    %v348 = vunpack.c.l.b16 %v186
    %v349 = vunpack.c.h.b16 %v186
    %v350 = vunpack.c.l.b16 %v187
    %v351 = vunpack.c.h.b16 %v187
    %v352 = vunpack.c.l.b16 %v188
    %v353 = vunpack.c.h.b16 %v188
    %v354 = vunpack.c.l.b16 %v189
    %v355 = vunpack.c.h.b16 %v189
    %v356 = vunpack.c.l.b16 %v190
    %v357 = vunpack.c.h.b16 %v190
    %v358 = vunpack.c.l.b16 %v191
    %v359 = vunpack.c.h.b16 %v191
    %v360 = vunpack.c.l.b16 %v192
    %v361 = vunpack.c.h.b16 %v192
    %v362 = vunpack.c.l.b16 %v193
    %v363 = vunpack.c.h.b16 %v193
    %v364 = vunpack.c.l.b16 %v194
    %v365 = vunpack.c.h.b16 %v194
    %v366 = vunpack.c.l.b16 %v195
    %v367 = vunpack.c.h.b16 %v195
    %v368 = vunpack.c.l.b16 %v196
    %v369 = vunpack.c.h.b16 %v196
    %v370 = vunpack.c.l.b16 %v197
    %v371 = vunpack.c.h.b16 %v197
    %v372 = vunpack.c.l.b16 %v198
    %v373 = vunpack.c.h.b16 %v198
    %v374 = vunpack.c.l.b16 %v199
    %v375 = vunpack.c.h.b16 %v199
    %v376 = vunpack.c.l.b16 %v200
    %v377 = vunpack.c.h.b16 %v200
    %v378 = vunpack.c.l.b16 %v201
    %v379 = vunpack.c.h.b16 %v201
    %v380 = vunpack.c.l.b16 %v202
    %v381 = vunpack.c.h.b16 %v202
    %v382 = vunpack.c.l.b16 %v203
    %v383 = vunpack.c.h.b16 %v203
    %v384 = vunpack.c.l.b16 %v204
    %v385 = vunpack.c.h.b16 %v204
    %v386 = vunpack.c.l.b16 %v205
    %v387 = vunpack.c.h.b16 %v205
    %v388 = vunpack.c.l.b16 %v206
    %v389 = vunpack.c.h.b16 %v206
    %v390 = vunpack.c.l.b16 %v207
    %v391 = vunpack.c.h.b16 %v207
    %v392 = vunpack.c.l.b16 %v208
    %v393 = vunpack.c.h.b16 %v208
    %v394 = vunpack.c.l.b16 %v209
    %v395 = vunpack.c.h.b16 %v209
    %v396 = vunpack.c.l.b16 %v210
    %v397 = vunpack.c.h.b16 %v210
    %v398 = vunpack.c.l.b16 %v211
    %v399 = vunpack.c.h.b16 %v211
    %v400 = vunpack.c.l.b16 %v212
    %v401 = vunpack.c.h.b16 %v212
    %v402 = vunpack.c.l.b16 %v213
    %v403 = vunpack.c.h.b16 %v213
    %v404 = vunpack.c.l.b16 %v214
    %v405 = vunpack.c.h.b16 %v214
    %v406 = vunpack.c.l.b16 %v215
    %v407 = vunpack.c.h.b16 %v215
    %v408 = vpack.c.b16 %v282, %v280
    %v409 = vpack.c.b16 %v283, %v281
    %v410 = vpack.c.b16 %v286, %v284
    %v411 = vpack.c.b16 %v287, %v285
    %v412 = vpack.c.b16 %v290, %v288
    %v413 = vpack.c.b16 %v291, %v289
    %v414 = vpack.c.b16 %v294, %v292
    %v415 = vpack.c.b16 %v295, %v293
    %v416 = vpack.c.b16 %v298, %v296
    %v417 = vpack.c.b16 %v299, %v297
    %v418 = vpack.c.b16 %v302, %v300
    %v419 = vpack.c.b16 %v303, %v301
    %v420 = vpack.c.b16 %v306, %v304
    %v421 = vpack.c.b16 %v307, %v305
    %v422 = vpack.c.b16 %v310, %v308
    %v423 = vpack.c.b16 %v311, %v309
    %v424 = vpack.c.b16 %v314, %v312
    %v425 = vpack.c.b16 %v315, %v313
    %v426 = vpack.c.b16 %v318, %v316
    %v427 = vpack.c.b16 %v319, %v317
    %v428 = vpack.c.b16 %v322, %v320
    %v429 = vpack.c.b16 %v323, %v321
    %v430 = vpack.c.b16 %v326, %v324
    %v431 = vpack.c.b16 %v327, %v325
    %v432 = vpack.c.b16 %v330, %v328
    %v433 = vpack.c.b16 %v331, %v329
    %v434 = vpack.c.b16 %v334, %v332
    %v435 = vpack.c.b16 %v335, %v333
    %v436 = vpack.c.b16 %v338, %v336
    %v437 = vpack.c.b16 %v339, %v337
    %v438 = vpack.c.b16 %v342, %v340
    %v439 = vpack.c.b16 %v343, %v341
    %v440 = vpack.c.b16 %v346, %v344
    %v441 = vpack.c.b16 %v347, %v345
    %v442 = vpack.c.b16 %v350, %v348
    %v443 = vpack.c.b16 %v351, %v349
    %v444 = vpack.c.b16 %v354, %v352
    %v445 = vpack.c.b16 %v355, %v353
    %v446 = vpack.c.b16 %v358, %v356
    %v447 = vpack.c.b16 %v359, %v357
    %v448 = vpack.c.b16 %v362, %v360
    %v449 = vpack.c.b16 %v363, %v361
    %v450 = vpack.c.b16 %v366, %v364
    %v451 = vpack.c.b16 %v367, %v365
    %v452 = vpack.c.b16 %v370, %v368
    %v453 = vpack.c.b16 %v371, %v369
    %v454 = vpack.c.b16 %v374, %v372
    %v455 = vpack.c.b16 %v375, %v373
    %v456 = vpack.c.b16 %v378, %v376
    %v457 = vpack.c.b16 %v379, %v377
    %v458 = vpack.c.b16 %v382, %v380
    %v459 = vpack.c.b16 %v383, %v381
    %v460 = vpack.c.b16 %v386, %v384
    %v461 = vpack.c.b16 %v387, %v385
    %v462 = vpack.c.b16 %v390, %v388
    %v463 = vpack.c.b16 %v391, %v389
    %v464 = vpack.c.b16 %v394, %v392
    %v465 = vpack.c.b16 %v395, %v393
    %v466 = vpack.c.b16 %v398, %v396
    %v467 = vpack.c.b16 %v399, %v397
    %v468 = vpack.c.b16 %v402, %v400
    %v469 = vpack.c.b16 %v403, %v401
    %v470 = vpack.c.b16 %v406, %v404
    %v471 = vpack.c.b16 %v407, %v405
    %536 = vmatpush.bf16.msra.mxu0 %v422
    %537 = vmatpush.bf16.msra.mxu0 %v420
    %538 = vmatpush.bf16.msra.mxu0 %v418
    %539 = vmatpush.bf16.msra.mxu0 %v416
    %540 = vmatpush.bf16.msra.mxu0 %v414
    %541 = vmatpush.bf16.msra.mxu0 %v412
    %542 = vmatpush.bf16.msra.mxu0 %v410
    %543 = vmatpush.bf16.msra.mxu0 %v408
    %544 = vmatmul.bf16.gmra.mxu0 %v129
    %v545 = vpop.f32.mrf.mxu0
    %v546 = vadd.f32 0.0, %v545
    %v547 = vpop.f32.mrf.mxu0
    %v548 = vadd.f32 0.0, %v547
    %549 = vmatmul.bf16.gmra.mxu0 %v133
    %v550 = vpop.f32.mrf.mxu0
    %v551 = vadd.f32 0.0, %v550
    %v552 = vpop.f32.mrf.mxu0
    %v553 = vadd.f32 0.0, %v552
    %554 = vdwg.mxu0
    %555 = vmatpush.bf16.msra.mxu0 %v438
    %556 = vmatpush.bf16.msra.mxu0 %v436
    %557 = vmatpush.bf16.msra.mxu0 %v434
    %558 = vmatpush.bf16.msra.mxu0 %v432
    %559 = vmatpush.bf16.msra.mxu0 %v430
    %560 = vmatpush.bf16.msra.mxu0 %v428
    %561 = vmatpush.bf16.msra.mxu0 %v426
    %562 = vmatpush.bf16.msra.mxu0 %v424
    %563 = vmatmul.bf16.gmra.mxu0 %v130
    %v564 = vpop.f32.mrf.mxu0
    %v565 = vadd.f32 %v546, %v564
    %v566 = vpop.f32.mrf.mxu0
    %v567 = vadd.f32 %v548, %v566
    %568 = vmatmul.bf16.gmra.mxu0 %v134
    %v569 = vpop.f32.mrf.mxu0
    %v570 = vadd.f32 %v551, %v569
    %v571 = vpop.f32.mrf.mxu0
    %v572 = vadd.f32 %v553, %v571
    %573 = vdwg.mxu0
    %574 = vmatpush.bf16.msra.mxu0 %v454
    %575 = vmatpush.bf16.msra.mxu0 %v452
    %576 = vmatpush.bf16.msra.mxu0 %v450
    %577 = vmatpush.bf16.msra.mxu0 %v448
    %578 = vmatpush.bf16.msra.mxu0 %v446
    %579 = vmatpush.bf16.msra.mxu0 %v444
    %580 = vmatpush.bf16.msra.mxu0 %v442
    %581 = vmatpush.bf16.msra.mxu0 %v440
    %582 = vmatmul.bf16.gmra.mxu0 %v131
    %v583 = vpop.f32.mrf.mxu0
    %v584 = vadd.f32 %v565, %v583
    %v585 = vpop.f32.mrf.mxu0
    %v586 = vadd.f32 %v567, %v585
    %587 = vmatmul.bf16.gmra.mxu0 %v135
    %v588 = vpop.f32.mrf.mxu0
    %v589 = vadd.f32 %v570, %v588
    %v590 = vpop.f32.mrf.mxu0
    %v591 = vadd.f32 %v572, %v590
    %592 = vdwg.mxu0
    %593 = vmatpush.bf16.msra.mxu0 %v470
    %594 = vmatpush.bf16.msra.mxu0 %v468
    %595 = vmatpush.bf16.msra.mxu0 %v466
    %596 = vmatpush.bf16.msra.mxu0 %v464
    %597 = vmatpush.bf16.msra.mxu0 %v462
    %598 = vmatpush.bf16.msra.mxu0 %v460
    %599 = vmatpush.bf16.msra.mxu0 %v458
    %600 = vmatpush.bf16.msra.mxu0 %v456
    %601 = vmatmul.bf16.gmra.mxu0 %v132
    %v602 = vpop.f32.mrf.mxu0
    %v603 = vadd.f32 %v584, %v602
    %v604 = vpop.f32.mrf.mxu0
    %v605 = vadd.f32 %v586, %v604
    %606 = vmatmul.bf16.gmra.mxu0 %v136
    %v607 = vpop.f32.mrf.mxu0
    %v608 = vadd.f32 %v589, %v607
    %v609 = vpop.f32.mrf.mxu0
    %v610 = vadd.f32 %v591, %v609
    %611 = vdwg.mxu0
    %612 = vmatpush.bf16.msra.mxu0 %v423
    %613 = vmatpush.bf16.msra.mxu0 %v421
    %614 = vmatpush.bf16.msra.mxu0 %v419
    %615 = vmatpush.bf16.msra.mxu0 %v417
    %616 = vmatpush.bf16.msra.mxu0 %v415
    %617 = vmatpush.bf16.msra.mxu0 %v413
    %618 = vmatpush.bf16.msra.mxu0 %v411
    %619 = vmatpush.bf16.msra.mxu0 %v409
    %620 = vmatmul.bf16.gmra.mxu0 %v129
    %v621 = vpop.f32.mrf.mxu0
    %v622 = vadd.f32 0.0, %v621
    %v623 = vpop.f32.mrf.mxu0
    %v624 = vadd.f32 0.0, %v623
    %625 = vmatmul.bf16.gmra.mxu0 %v133
    %v626 = vpop.f32.mrf.mxu0
    %v627 = vadd.f32 0.0, %v626
    %v628 = vpop.f32.mrf.mxu0
    %v629 = vadd.f32 0.0, %v628
    %630 = vdwg.mxu0
    %631 = vmatpush.bf16.msra.mxu0 %v439
    %632 = vmatpush.bf16.msra.mxu0 %v437
    %633 = vmatpush.bf16.msra.mxu0 %v435
    %634 = vmatpush.bf16.msra.mxu0 %v433
    %635 = vmatpush.bf16.msra.mxu0 %v431
    %636 = vmatpush.bf16.msra.mxu0 %v429
    %637 = vmatpush.bf16.msra.mxu0 %v427
    %638 = vmatpush.bf16.msra.mxu0 %v425
    %639 = vmatmul.bf16.gmra.mxu0 %v130
    %v640 = vpop.f32.mrf.mxu0
    %v641 = vadd.f32 %v622, %v640
    %v642 = vpop.f32.mrf.mxu0
    %v643 = vadd.f32 %v624, %v642
    %644 = vmatmul.bf16.gmra.mxu0 %v134
    %v645 = vpop.f32.mrf.mxu0
    %v646 = vadd.f32 %v627, %v645
    %v647 = vpop.f32.mrf.mxu0
    %v648 = vadd.f32 %v629, %v647
    %649 = vdwg.mxu0
    %650 = vmatpush.bf16.msra.mxu0 %v455
    %651 = vmatpush.bf16.msra.mxu0 %v453
    %652 = vmatpush.bf16.msra.mxu0 %v451
    %653 = vmatpush.bf16.msra.mxu0 %v449
    %654 = vmatpush.bf16.msra.mxu0 %v447
    %655 = vmatpush.bf16.msra.mxu0 %v445
    %656 = vmatpush.bf16.msra.mxu0 %v443
    %657 = vmatpush.bf16.msra.mxu0 %v441
    %658 = vmatmul.bf16.gmra.mxu0 %v131
    %v659 = vpop.f32.mrf.mxu0
    %v660 = vadd.f32 %v641, %v659
    %v661 = vpop.f32.mrf.mxu0
    %v662 = vadd.f32 %v643, %v661
    %663 = vmatmul.bf16.gmra.mxu0 %v135
    %v664 = vpop.f32.mrf.mxu0
    %v665 = vadd.f32 %v646, %v664
    %v666 = vpop.f32.mrf.mxu0
    %v667 = vadd.f32 %v648, %v666
    %668 = vdwg.mxu0
    %669 = vmatpush.bf16.msra.mxu0 %v471
    %670 = vmatpush.bf16.msra.mxu0 %v469
    %671 = vmatpush.bf16.msra.mxu0 %v467
    %672 = vmatpush.bf16.msra.mxu0 %v465
    %673 = vmatpush.bf16.msra.mxu0 %v463
    %674 = vmatpush.bf16.msra.mxu0 %v461
    %675 = vmatpush.bf16.msra.mxu0 %v459
    %676 = vmatpush.bf16.msra.mxu0 %v457
    %677 = vmatmul.bf16.gmra.mxu0 %v132
    %v678 = vpop.f32.mrf.mxu0
    %v679 = vadd.f32 %v660, %v678
    %v680 = vpop.f32.mrf.mxu0
    %v681 = vadd.f32 %v662, %v680
    %682 = vmatmul.bf16.gmra.mxu0 %v136
    %v683 = vpop.f32.mrf.mxu0
    %v684 = vadd.f32 %v665, %v683
    %v685 = vpop.f32.mrf.mxu0
    %v686 = vadd.f32 %v667, %v685
    %687 = vdwg.mxu0
    %v692 = vunpack.c.l.b16 %v73
    %v693 = vunpack.c.l.b16 %v74
    %v694 = vunpack.c.l.b16 %v75
    %v695 = vunpack.c.l.b16 %v76
    %v696 = vpack.c.b16 %v693, %v692
    %v697 = vpack.c.b16 %v695, %v694
    %v713 = vunpack.c.l.b16 %v137
    %v714 = vunpack.c.h.b16 %v137
    %v715 = vunpack.c.l.b16 %v138
    %v716 = vunpack.c.h.b16 %v138
    %v717 = vunpack.c.l.b16 %v139
    %v718 = vunpack.c.h.b16 %v139
    %v719 = vunpack.c.l.b16 %v140
    %v720 = vunpack.c.h.b16 %v140
    %v721 = vunpack.c.l.b16 %v141
    %v722 = vunpack.c.h.b16 %v141
    %v723 = vunpack.c.l.b16 %v142
    %v724 = vunpack.c.h.b16 %v142
    %v725 = vunpack.c.l.b16 %v143
    %v726 = vunpack.c.h.b16 %v143
    %v727 = vunpack.c.l.b16 %v144
    %v728 = vunpack.c.h.b16 %v144
    %v729 = vunpack.c.l.b16 %v145
    %v730 = vunpack.c.h.b16 %v145
    %v731 = vunpack.c.l.b16 %v146
    %v732 = vunpack.c.h.b16 %v146
    %v733 = vunpack.c.l.b16 %v147
    %v734 = vunpack.c.h.b16 %v147
    %v735 = vunpack.c.l.b16 %v148
    %v736 = vunpack.c.h.b16 %v148
    %v737 = vunpack.c.l.b16 %v149
    %v738 = vunpack.c.h.b16 %v149
    %v739 = vunpack.c.l.b16 %v150
    %v740 = vunpack.c.h.b16 %v150
    %v741 = vunpack.c.l.b16 %v151
    %v742 = vunpack.c.h.b16 %v151
    %v743 = vpack.c.b16 %v715, %v713
    %v744 = vpack.c.b16 %v716, %v714
    %v745 = vpack.c.b16 %v719, %v717
    %v746 = vpack.c.b16 %v720, %v718
    %v747 = vpack.c.b16 %v723, %v721
    %v748 = vpack.c.b16 %v724, %v722
    %v749 = vpack.c.b16 %v727, %v725
    %v750 = vpack.c.b16 %v728, %v726
    %v751 = vpack.c.b16 %v731, %v729
    %v752 = vpack.c.b16 %v732, %v730
    %v753 = vpack.c.b16 %v735, %v733
    %v754 = vpack.c.b16 %v736, %v734
    %v755 = vpack.c.b16 %v739, %v737
    %v756 = vpack.c.b16 %v740, %v738
    %v757 = vpack.c.b16 %v741, %v741
    %v758 = vpack.c.b16 %v742, %v742
    %vm773 = vcmask 982016
    %v775 = vsel %vm773, %v696, 0
    %v778 = vsel %vm773, %v697, 0
    %vm780 = vcmask 1043456
    %v782 = vsel %vm780, %v757, 0
    %v785 = vsel %vm780, %v758, 0
    %787 = vmatpush.bf16.msra.mxu0 %v782
    %788 = vmatpush.bf16.msra.mxu0 %v755
    %789 = vmatpush.bf16.msra.mxu0 %v753
    %790 = vmatpush.bf16.msra.mxu0 %v751
    %791 = vmatpush.bf16.msra.mxu0 %v749
    %792 = vmatpush.bf16.msra.mxu0 %v747
    %793 = vmatpush.bf16.msra.mxu0 %v745
    %794 = vmatpush.bf16.msra.mxu0 %v743
    %795 = vmatmul.bf16.gmra.mxu0 %v775
    %v796 = vpop.f32.mrf.mxu0
    %v797 = vadd.f32 %v603, %v796
    %v798 = vpop.f32.mrf.mxu0
    %v799 = vadd.f32 %v605, %v798
    %800 = vmatmul.bf16.gmra.mxu0 %v778
    %v801 = vpop.f32.mrf.mxu0
    %v802 = vadd.f32 %v608, %v801
    %v803 = vpop.f32.mrf.mxu0
    %v804 = vadd.f32 %v610, %v803
    %805 = vdwg.mxu0
    %806 = vmatpush.bf16.msra.mxu0 %v785
    %807 = vmatpush.bf16.msra.mxu0 %v756
    %808 = vmatpush.bf16.msra.mxu0 %v754
    %809 = vmatpush.bf16.msra.mxu0 %v752
    %810 = vmatpush.bf16.msra.mxu0 %v750
    %811 = vmatpush.bf16.msra.mxu0 %v748
    %812 = vmatpush.bf16.msra.mxu0 %v746
    %813 = vmatpush.bf16.msra.mxu0 %v744
    %814 = vmatmul.bf16.gmra.mxu0 %v775
    %v815 = vpop.f32.mrf.mxu0
    %v816 = vadd.f32 %v679, %v815
    %v817 = vpop.f32.mrf.mxu0
    %v818 = vadd.f32 %v681, %v817
    %819 = vmatmul.bf16.gmra.mxu0 %v778
    %v820 = vpop.f32.mrf.mxu0
    %v821 = vadd.f32 %v684, %v820
    %v822 = vpop.f32.mrf.mxu0
    %v823 = vadd.f32 %v686, %v822
    %824 = vdwg.mxu0
    %v825 = vld [vmem:[%s4] sm:$0x3]
    %v827 = vperm.slane %v825, 0
    %v828 = vperm.slane %v825, 1
    %v831 = vadd.f32 %v797, %v827
    %v832 = vadd.f32 %v816, %v828
    %v833 = vadd.f32 %v799, %v827
    %v834 = vadd.f32 %v818, %v828
    %v835 = vadd.f32 %v802, %v827
    %v836 = vadd.f32 %v821, %v828
    %v837 = vadd.f32 %v804, %v827
    %v838 = vadd.f32 %v823, %v828
    %v839 = vmax.f32 %v831, 0.0
    %v840 = vmax.f32 %v832, 0.0
    %v841 = vmax.f32 %v833, 0.0
    %v842 = vmax.f32 %v834, 0.0
    %v843 = vmax.f32 %v835, 0.0
    %v844 = vmax.f32 %v836, 0.0
    %v845 = vmax.f32 %v837, 0.0
    %v846 = vmax.f32 %v838, 0.0
    %v847 = vpack.c.bf16 %v841, %v839
    %v848 = vpack.c.bf16 %v842, %v840
    %v849 = vpack.c.bf16 %v845, %v843
    %v850 = vpack.c.bf16 %v846, %v844
    %v851 = vld [vmem:[#allocation6] sm:$0xf]
    %v852 = vld [vmem:[#allocation6 + $0x4] sm:$0xf]
    %v853 = vld [vmem:[#allocation6 + $0x8] sm:$0xf]
    %v854 = vld [vmem:[#allocation6 + $0xc] sm:$0xf]
    %v855 = vld [vmem:[#allocation6 + $0x10] sm:$0xf]
    %v856 = vld [vmem:[#allocation6 + $0x14] sm:$0xf]
    %v857 = vld [vmem:[#allocation6 + $0x18] sm:$0xf]
    %v858 = vld [vmem:[#allocation6 + $0x1c] sm:$0xf]
    %v859 = vld [vmem:[#allocation6 + $0x20] sm:$0xf]
    %v860 = vld [vmem:[#allocation6 + $0x24] sm:$0xf]
    %v861 = vld [vmem:[#allocation6 + $0x28] sm:$0xf]
    %v862 = vld [vmem:[#allocation6 + $0x2c] sm:$0xf]
    %v863 = vld [vmem:[#allocation6 + $0x30] sm:$0xf]
    %v864 = vld [vmem:[#allocation6 + $0x34] sm:$0xf]
    %v865 = vld [vmem:[#allocation6 + $0x38] sm:$0xf]
    %v866 = vld [vmem:[#allocation6 + $0x3c] sm:$0xf]
    %v867 = vld [vmem:[#allocation6 + $0x40] sm:$0xf]
    %v868 = vld [vmem:[#allocation6 + $0x44] sm:$0xf]
    %v869 = vld [vmem:[#allocation6 + $0x48] sm:$0xf]
    %v870 = vld [vmem:[#allocation6 + $0x4c] sm:$0xf]
    %v871 = vld [vmem:[#allocation6 + $0x50] sm:$0xf]
    %v872 = vld [vmem:[#allocation6 + $0x54] sm:$0xf]
    %v873 = vld [vmem:[#allocation6 + $0x58] sm:$0xf]
    %v874 = vld [vmem:[#allocation6 + $0x5c] sm:$0xf]
    %v875 = vld [vmem:[#allocation6 + $0x60] sm:$0xf]
    %v876 = vld [vmem:[#allocation6 + $0x64] sm:$0xf]
    %v877 = vld [vmem:[#allocation6 + $0x68] sm:$0xf]
    %v878 = vld [vmem:[#allocation6 + $0x6c] sm:$0xf]
    %v879 = vld [vmem:[#allocation6 + $0x70] sm:$0xf]
    %v880 = vld [vmem:[#allocation6 + $0x74] sm:$0xf]
    %v881 = vld [vmem:[#allocation6 + $0x78] sm:$0xf]
    %v882 = vld [vmem:[#allocation6 + $0x7c] sm:$0xf]
    %v883 = vld [vmem:[%s6] sm:$0x1]
    %v885 = vperm.slane %v883, 0
    %v919 = vunpack.c.l.b16 %v851
    %v920 = vunpack.c.l.b16 %v852
    %v921 = vunpack.c.l.b16 %v853
    %v922 = vunpack.c.l.b16 %v854
    %v923 = vunpack.c.l.b16 %v855
    %v924 = vunpack.c.l.b16 %v856
    %v925 = vunpack.c.l.b16 %v857
    %v926 = vunpack.c.l.b16 %v858
    %v927 = vunpack.c.l.b16 %v859
    %v928 = vunpack.c.l.b16 %v860
    %v929 = vunpack.c.l.b16 %v861
    %v930 = vunpack.c.l.b16 %v862
    %v931 = vunpack.c.l.b16 %v863
    %v932 = vunpack.c.l.b16 %v864
    %v933 = vunpack.c.l.b16 %v865
    %v934 = vunpack.c.l.b16 %v866
    %v935 = vunpack.c.l.b16 %v867
    %v936 = vunpack.c.l.b16 %v868
    %v937 = vunpack.c.l.b16 %v869
    %v938 = vunpack.c.l.b16 %v870
    %v939 = vunpack.c.l.b16 %v871
    %v940 = vunpack.c.l.b16 %v872
    %v941 = vunpack.c.l.b16 %v873
    %v942 = vunpack.c.l.b16 %v874
    %v943 = vunpack.c.l.b16 %v875
    %v944 = vunpack.c.l.b16 %v876
    %v945 = vunpack.c.l.b16 %v877
    %v946 = vunpack.c.l.b16 %v878
    %v947 = vunpack.c.l.b16 %v879
    %v948 = vunpack.c.l.b16 %v880
    %v949 = vunpack.c.l.b16 %v881
    %v950 = vunpack.c.l.b16 %v882
    %v951 = vpack.c.b16 %v920, %v919
    %v952 = vpack.c.b16 %v922, %v921
    %v953 = vpack.c.b16 %v924, %v923
    %v954 = vpack.c.b16 %v926, %v925
    %v955 = vpack.c.b16 %v928, %v927
    %v956 = vpack.c.b16 %v930, %v929
    %v957 = vpack.c.b16 %v932, %v931
    %v958 = vpack.c.b16 %v934, %v933
    %v959 = vpack.c.b16 %v936, %v935
    %v960 = vpack.c.b16 %v938, %v937
    %v961 = vpack.c.b16 %v940, %v939
    %v962 = vpack.c.b16 %v942, %v941
    %v963 = vpack.c.b16 %v944, %v943
    %v964 = vpack.c.b16 %v946, %v945
    %v965 = vpack.c.b16 %v948, %v947
    %v966 = vpack.c.b16 %v950, %v949
    %983 = vmatpush.bf16.msra.mxu0 %v958
    %984 = vmatpush.bf16.msra.mxu0 %v957
    %985 = vmatpush.bf16.msra.mxu0 %v956
    %986 = vmatpush.bf16.msra.mxu0 %v955
    %987 = vmatpush.bf16.msra.mxu0 %v954
    %988 = vmatpush.bf16.msra.mxu0 %v953
    %989 = vmatpush.bf16.msra.mxu0 %v952
    %990 = vmatpush.bf16.msra.mxu0 %v951
    %991 = vmatmul.bf16.gmra.mxu0 %v847
    %v992 = vpop.f32.mrf.mxu0
    %v993 = vadd.f32 %v885, %v992
    %v994 = vpop.f32.mrf.mxu0
    %v995 = vadd.f32 %v885, %v994
    %996 = vmatmul.bf16.gmra.mxu0 %v849
    %v997 = vpop.f32.mrf.mxu0
    %v998 = vadd.f32 %v885, %v997
    %v999 = vpop.f32.mrf.mxu0
    %v1000 = vadd.f32 %v885, %v999
    %1001 = vdwg.mxu0
    %1002 = vmatpush.bf16.msra.mxu0 %v966
    %1003 = vmatpush.bf16.msra.mxu0 %v965
    %1004 = vmatpush.bf16.msra.mxu0 %v964
    %1005 = vmatpush.bf16.msra.mxu0 %v963
    %1006 = vmatpush.bf16.msra.mxu0 %v962
    %1007 = vmatpush.bf16.msra.mxu0 %v961
    %1008 = vmatpush.bf16.msra.mxu0 %v960
    %1009 = vmatpush.bf16.msra.mxu0 %v959
    %1010 = vmatmul.bf16.gmra.mxu0 %v848
    %v1011 = vpop.f32.mrf.mxu0
    %v1012 = vadd.f32 %v993, %v1011
    %v1013 = vpop.f32.mrf.mxu0
    %v1014 = vadd.f32 %v995, %v1013
    %1015 = vmatmul.bf16.gmra.mxu0 %v850
    %v1016 = vpop.f32.mrf.mxu0
    %v1017 = vadd.f32 %v998, %v1016
    %v1018 = vpop.f32.mrf.mxu0
    %v1019 = vadd.f32 %v1000, %v1018
    %1020 = vdwg.mxu0
    %v1021 = vlaneseq
    %v1022 = vand.u32 %v1021, 127
    %vm1023 = vcmp.lt.s32.totalorder %v1022, 6
    %v1024 = vsel %vm1023, %v1012, -inf
    %v1025 = vsel %vm1023, %v1014, -inf
    %v1026 = vsel %vm1023, %v1017, -inf
    %v1027 = vsel %vm1023, %v1019, -inf
    %1028 = vmax.xlane.f32.xlu0 %v1024
    %v1029 = vpop.xlane.xlu0 %1028
    %1030 = vmax.xlane.f32.xlu0 %v1025
    %v1031 = vpop.xlane.xlu0 %1030
    %1032 = vmax.xlane.f32.xlu0 %v1026
    %v1033 = vpop.xlane.xlu0 %1032
    %1034 = vmax.xlane.f32.xlu0 %v1027
    %v1035 = vpop.xlane.xlu0 %1034
    %v1036 = vsub.f32 %v1012, %v1029
    %v1037 = vsub.f32 %v1014, %v1031
    %v1038 = vsub.f32 %v1017, %v1033
    %v1039 = vsub.f32 %v1019, %v1035
    %v1040 = vmul.f32 %v1036, 1.442695
    %v1041 = vpow.pop %v1040
    %v1042 = vmul.f32 %v1037, 1.442695
    %v1043 = vpow.pop %v1042
    %v1044 = vmul.f32 %v1038, 1.442695
    %v1045 = vpow.pop %v1044
    %v1046 = vmul.f32 %v1039, 1.442695
    %v1047 = vpow.pop %v1046
    %v1048 = vsel %vm1023, %v1041, 0.0
    %v1049 = vsel %vm1023, %v1043, 0.0
    %v1050 = vsel %vm1023, %v1045, 0.0
    %v1051 = vsel %vm1023, %v1047, 0.0
    %1052 = vadd.xlane.f32.xlu0 %v1048
    %v1053 = vpop.xlane.xlu0 %1052
    %1054 = vadd.xlane.f32.xlu0 %v1049
    %v1055 = vpop.xlane.xlu0 %1054
    %1056 = vadd.xlane.f32.xlu0 %v1050
    %v1057 = vpop.xlane.xlu0 %1056
    %1058 = vadd.xlane.f32.xlu0 %v1051
    %v1059 = vpop.xlane.xlu0 %1058
    %v1060 = vrcp.pop %v1053
    %v1061 = vrcp.pop %v1055
    %v1062 = vrcp.pop %v1057
    %v1063 = vrcp.pop %v1059
    %v1064 = vmul.f32 %v1048, %v1060
    %v1065 = vmul.f32 %v1049, %v1061
    %v1066 = vmul.f32 %v1050, %v1062
    %v1067 = vmul.f32 %v1051, %v1063
    %vm1068 = vcmp.eq.s32.totalorder %v1022, 6
    %v1069 = vsel %vm1068, %v1012, 0.0
    %v1070 = vsel %vm1068, %v1014, 0.0
    %v1071 = vsel %vm1068, %v1017, 0.0
    %v1072 = vsel %vm1068, %v1019, 0.0
    %v1073 = vsel %vm1023, %v1064, %v1069
    %v1074 = vsel %vm1023, %v1065, %v1070
    %v1075 = vsel %vm1023, %v1066, %v1071
    %v1076 = vsel %vm1023, %v1067, %v1072
    %v1077 = vpack.c.bf16 %v1073, %v1073
    %v1078 = vpack.c.bf16 %v1074, %v1074
    %v1079 = vpack.c.bf16 %v1075, %v1075
    %v1080 = vpack.c.bf16 %v1076, %v1076
    %1081 = vst [vmem:[%s7] sm:$0xf] %v1077
    %1082 = vst [vmem:[%s7 + $0x4] sm:$0xf] %v1078
    %1083 = vst [vmem:[%s7 + $0x8] sm:$0xf] %v1079
    %1084 = vst [vmem:[%s7 + $0xc] sm:$0xf] %v1080
    // Predicated region
    $region42: #{policy_network_forward.1} parent=1 // pred_check
      _
    $region43: #{policy_network_forward.1} parent=1 // pred_check_branch
      %1086 = sbr.rel (0) target = $region45
    $region44: #{policy_network_forward.1} parent=1 // pred_region
      _
    $region45: #{policy_network_forward.1} parent=1 // pred_fallthru
      _
    // Predicated region
    $region46: #{policy_network_forward.1} parent=1 // pred_check
      _
    $region47: #{policy_network_forward.1} parent=1 // pred_check_branch
      %1088 = sbr.rel (0) target = $region49
    $region48: #{policy_network_forward.1} parent=1 // pred_region
      _
    $region49: #{policy_network_forward.1} parent=1 // pred_fallthru
      _
    %1089 = vsyncpa [#allocation3], 1
    %1090 = vsyncpa [#allocation5], 1

</llo_original>
